<compile_context>
chip_gen: v7x
topology: tpu7x:2x2x1
jax: 0.10.0
libtpu: 0.0.40
codegen_flags: <defaults>
</compile_context>

<pallas_src>
import functools
import math

import jax
import jax.numpy as jnp
from jax.experimental import pallas as pl
from jax.experimental.pallas import tpu as pltpu

LANE = 128  # output lane padding for a full-lane (unmasked) final store


def _round_up(n: int, m: int) -> int:
    return ((n + m - 1) // m) * m


def _qnet_kernel(x_ref, w1_ref, b1_ref, w2_ref, b2_ref, w3_ref, b3_ref, o_ref):
    x = x_ref[...]                       # (TB, S)  f32
    w1 = w1_ref[...]                     # (S, H)   f32 (tiny, kept f32)
    tb = x.shape[0]
    hidden = w1.shape[1]

    # ---- Layer 1 on the VPU (K = state_dims is tiny; see header comment).
    acc = jnp.broadcast_to(b1_ref[...], (tb, hidden)).astype(jnp.float32)
    for k in range(w1.shape[0]):         # static, S iterations (S = 5)
        acc = acc + x[:, k:k + 1] * w1[k:k + 1, :]
    h1 = jnp.maximum(acc, 0.0)

    # ---- Layers 2/3 on the MXU: bf16 operands, f32 accumulation.
    h2 = jnp.dot(h1.astype(jnp.bfloat16), w2_ref[...],
                 preferred_element_type=jnp.float32) + b2_ref[...]
    h2 = jnp.maximum(h2, 0.0)
    q = jnp.dot(h2.astype(jnp.bfloat16), w3_ref[...],
                preferred_element_type=jnp.float32) + b3_ref[...]
    o_ref[...] = q.astype(o_ref.dtype)   # (TB, 128): full-lane, unmasked vst


@functools.partial(
    jax.jit,
    static_argnames=("action_dims", "block_batch", "return_padded",
                     "vmem_limit_bytes"))
def qnetwork_forward(x, w1, b1, w2, b2, w3p, b3p, *, action_dims,
                     block_batch=2048, return_padded=False,
                     vmem_limit_bytes=None):
    batch, state_dims = x.shape
    hidden = w1.shape[1]
    act_pad = w3p.shape[1]               # = 128 (lane-padded output width)

    # --- Balanced batch tiles: fewest steps under block_batch, then divide the
    #     batch (nearly) evenly across them so the last block isn't ragged.
    tb_cap = min(block_batch, _round_up(batch, 8))
    n_steps = -(-batch // tb_cap)                      # ceil
    tb = _round_up(-(-batch // n_steps), 8)            # balanced, multiple of 8
    grid = (pl.cdiv(batch, tb),)

    resident = lambda i: (0, 0)          # weights/biases: same block every step

    compiler_params = pltpu.CompilerParams(
        dimension_semantics=("parallel",),
        vmem_limit_bytes=vmem_limit_bytes,
    )

    q_pad = pl.pallas_call(
        _qnet_kernel,
        out_shape=jax.ShapeDtypeStruct((batch, act_pad), jnp.float32),
        grid=grid,
        in_specs=[
            pl.BlockSpec((tb, state_dims), lambda i: (i, 0)),   # x: tiled rows
            pl.BlockSpec((state_dims, hidden), resident),       # w1
            pl.BlockSpec((1, hidden), resident),                # b1
            pl.BlockSpec((hidden, hidden), resident),           # w2
            pl.BlockSpec((1, hidden), resident),                # b2
            pl.BlockSpec((hidden, act_pad), resident),          # w3 (padded N)
            pl.BlockSpec((1, act_pad), resident),               # b3 (padded N)
        ],
        out_specs=pl.BlockSpec((tb, act_pad), lambda i: (i, 0)),
        compiler_params=compiler_params,
    )(x, w1, b1, w2, b2, w3p, b3p)

    if return_padded:
        # Preferred for fused consumers (argmax / TD-target gather): avoids a
        # separate whole-output re-read/re-write slice op after the kernel.
        return q_pad
    return q_pad[:, :action_dims]


def init_qnetwork_params(key, state_dims=5, action_dims=6, hidden_dims=128):
    """Init mimicking nn.Linear default (uniform +/- 1/sqrt(fan_in)).

    Weights are stored as (in_features, out_features) (transposed vs PyTorch).
    w2/w3 are stored in bf16 for the MXU; w1 (tiny, VPU path) stays f32.
    w3/b3 are zero-padded in the output dim up to 128 lanes so the kernel's
    final store is a full-lane vst; the pad is sliced off (or ignored by the
    consumer) outside the kernel.

    Model-level note (v6e/v7x): hidden_dims=256 would double useful FLOPs per
    MXU push at the same cadence on the 2x256x256 MXU generations; kept at 128
    to match the PyTorch spec.
    """
    ks = jax.random.split(key, 6)
    act_pad = _round_up(action_dims, LANE)

    def linear(kw, kb, fan_in, fan_out):
        bound = 1.0 / math.sqrt(fan_in)
        w = jax.random.uniform(kw, (fan_in, fan_out), jnp.float32, -bound, bound)
        b = jax.random.uniform(kb, (1, fan_out), jnp.float32, -bound, bound)
        return w, b

    w1, b1 = linear(ks[0], ks[1], state_dims, hidden_dims)
    w2, b2 = linear(ks[2], ks[3], hidden_dims, hidden_dims)
    w3, b3 = linear(ks[4], ks[5], hidden_dims, action_dims)

    w3p = jnp.zeros((hidden_dims, act_pad), jnp.float32).at[:, :action_dims].set(w3)
    b3p = jnp.zeros((1, act_pad), jnp.float32).at[:, :action_dims].set(b3)

    return (w1, b1,
            w2.astype(jnp.bfloat16), b2,
            w3p.astype(jnp.bfloat16), b3p)


def qnetwork_reference(x, w1, b1, w2, b2, w3p, b3p, *, action_dims):
    """Pure-JAX f32 reference matching the PyTorch forward semantics."""
    h1 = jnp.maximum(x @ w1 + b1, 0.0)
    h2 = jnp.maximum(h1 @ w2.astype(jnp.float32) + b2, 0.0)
    q = h2 @ w3p.astype(jnp.float32) + b3p
    return q[:, :action_dims]


if __name__ == "__main__":
    state_dims, action_dims, hidden_dims = 5, 6, 128
    batch = 8

    key = jax.random.PRNGKey(0)
    kx, kb, kp = jax.random.split(key, 3)
    x = jax.random.normal(kx, (batch, state_dims), jnp.float32)
    params = init_qnetwork_params(kp, state_dims, action_dims, hidden_dims)

    # Small (inference-style) batch: single block, no grid overhead.
    q = qnetwork_forward(x, *params, action_dims=action_dims)
    q = jax.block_until_ready(q)
    q_ref = qnetwork_reference(x, *params, action_dims=action_dims)
    assert q.shape == (batch, action_dims), q.shape
    # bf16 MXU operands with f32 accumulation -> relaxed tolerance vs f32 ref.
    assert jnp.allclose(q, q_ref, atol=3e-2, rtol=3e-2), \
        float(jnp.max(jnp.abs(q - q_ref)))

    # Larger batch with a small block_batch exercises the balanced multi-step
    # grid (1040 -> 3 even steps of 352, not 3x512) and the padded-output path
    # (consumer indexes the padded Q lazily instead of a wrapper-side slice).
    big = 1040
    xb = jax.random.normal(kb, (big, state_dims), jnp.float32)
    qb_pad = qnetwork_forward(xb, *params, action_dims=action_dims,
                              block_batch=512, return_padded=True)
    qb_pad = jax.block_until_ready(qb_pad)
    qb_ref = qnetwork_reference(xb, *params, action_dims=action_dims)
    assert qb_pad.shape == (big, LANE), qb_pad.shape
    assert jnp.allclose(qb_pad[:, :action_dims], qb_ref, atol=3e-2, rtol=3e-2), \
        float(jnp.max(jnp.abs(qb_pad[:, :action_dims] - qb_ref)))

    print("KERNEL_OK")
</pallas_src>

<mosaic_0001>
module attributes {stable_mosaic.version = 11 : i64} {
  func.func @_qnet_kernel(%arg0: i32, %arg1: memref<8x5xf32, #tpu.memory_space<vmem>>, %arg2: memref<5x128xf32, #tpu.memory_space<vmem>>, %arg3: memref<1x128xf32, #tpu.memory_space<vmem>>, %arg4: memref<128x128xbf16, #tpu.memory_space<vmem>>, %arg5: memref<1x128xf32, #tpu.memory_space<vmem>>, %arg6: memref<128x128xbf16, #tpu.memory_space<vmem>>, %arg7: memref<1x128xf32, #tpu.memory_space<vmem>>, %arg8: memref<8x128xf32, #tpu.memory_space<vmem>>) attributes {dimension_semantics = [#tpu.dimension_semantics<parallel>], iteration_bounds = array<i64: 1>, scalar_prefetch = 0 : i64, scratch_operands = 0 : i64, tpu.core_type = #tpu.core_type<tc>, window_params = [{transform_indices = @transform_0, window_bounds = array<i64: 8, 5>}, {pipeline_mode = #tpu.pipeline_mode<synchronous>, transform_indices = @transform_1, window_bounds = array<i64: 5, 128>}, {pipeline_mode = #tpu.pipeline_mode<synchronous>, transform_indices = @transform_2, window_bounds = array<i64: 1, 128>}, {pipeline_mode = #tpu.pipeline_mode<synchronous>, transform_indices = @transform_3, window_bounds = array<i64: 128, 128>}, {pipeline_mode = #tpu.pipeline_mode<synchronous>, transform_indices = @transform_4, window_bounds = array<i64: 1, 128>}, {pipeline_mode = #tpu.pipeline_mode<synchronous>, transform_indices = @transform_5, window_bounds = array<i64: 128, 128>}, {pipeline_mode = #tpu.pipeline_mode<synchronous>, transform_indices = @transform_6, window_bounds = array<i64: 1, 128>}, {transform_indices = @transform_7, window_bounds = array<i64: 8, 128>}]} {
    %c0 = arith.constant 0 : index
    %c0_0 = arith.constant 0 : index
    %0 = vector.load %arg1[%c0, %c0_0] : memref<8x5xf32, #tpu.memory_space<vmem>>, vector<8x5xf32>
    %c0_1 = arith.constant 0 : index
    %c0_2 = arith.constant 0 : index
    %1 = vector.load %arg2[%c0_1, %c0_2] : memref<5x128xf32, #tpu.memory_space<vmem>>, vector<5x128xf32>
    %c0_3 = arith.constant 0 : index
    %c0_4 = arith.constant 0 : index
    %2 = vector.load %arg3[%c0_3, %c0_4] : memref<1x128xf32, #tpu.memory_space<vmem>>, vector<1x128xf32>
    %3 = vector.shape_cast %2 : vector<1x128xf32> to vector<1x128xf32>
    %4 = vector.broadcast %3 : vector<1x128xf32> to vector<8x128xf32>
    %5 = vector.extract_strided_slice %0 {offsets = [0, 0], sizes = [8, 1], strides = [1, 1]} : vector<8x5xf32> to vector<8x1xf32>
    %6 = vector.extract_strided_slice %1 {offsets = [0, 0], sizes = [1, 128], strides = [1, 1]} : vector<5x128xf32> to vector<1x128xf32>
    %7 = vector.broadcast %5 : vector<8x1xf32> to vector<8x128xf32>
    %8 = vector.broadcast %6 : vector<1x128xf32> to vector<8x128xf32>
    %9 = arith.mulf %7, %8 : vector<8x128xf32>
    %10 = arith.addf %4, %9 : vector<8x128xf32>
    %11 = vector.extract_strided_slice %0 {offsets = [0, 1], sizes = [8, 1], strides = [1, 1]} : vector<8x5xf32> to vector<8x1xf32>
    %12 = vector.extract_strided_slice %1 {offsets = [1, 0], sizes = [1, 128], strides = [1, 1]} : vector<5x128xf32> to vector<1x128xf32>
    %13 = vector.broadcast %11 : vector<8x1xf32> to vector<8x128xf32>
    %14 = vector.broadcast %12 : vector<1x128xf32> to vector<8x128xf32>
    %15 = arith.mulf %13, %14 : vector<8x128xf32>
    %16 = arith.addf %10, %15 : vector<8x128xf32>
    %17 = vector.extract_strided_slice %0 {offsets = [0, 2], sizes = [8, 1], strides = [1, 1]} : vector<8x5xf32> to vector<8x1xf32>
    %18 = vector.extract_strided_slice %1 {offsets = [2, 0], sizes = [1, 128], strides = [1, 1]} : vector<5x128xf32> to vector<1x128xf32>
    %19 = vector.broadcast %17 : vector<8x1xf32> to vector<8x128xf32>
    %20 = vector.broadcast %18 : vector<1x128xf32> to vector<8x128xf32>
    %21 = arith.mulf %19, %20 : vector<8x128xf32>
    %22 = arith.addf %16, %21 : vector<8x128xf32>
    %23 = vector.extract_strided_slice %0 {offsets = [0, 3], sizes = [8, 1], strides = [1, 1]} : vector<8x5xf32> to vector<8x1xf32>
    %24 = vector.extract_strided_slice %1 {offsets = [3, 0], sizes = [1, 128], strides = [1, 1]} : vector<5x128xf32> to vector<1x128xf32>
    %25 = vector.broadcast %23 : vector<8x1xf32> to vector<8x128xf32>
    %26 = vector.broadcast %24 : vector<1x128xf32> to vector<8x128xf32>
    %27 = arith.mulf %25, %26 : vector<8x128xf32>
    %28 = arith.addf %22, %27 : vector<8x128xf32>
    %29 = vector.extract_strided_slice %0 {offsets = [0, 4], sizes = [8, 1], strides = [1, 1]} : vector<8x5xf32> to vector<8x1xf32>
    %30 = vector.extract_strided_slice %1 {offsets = [4, 0], sizes = [1, 128], strides = [1, 1]} : vector<5x128xf32> to vector<1x128xf32>
    %31 = vector.broadcast %29 : vector<8x1xf32> to vector<8x128xf32>
    %32 = vector.broadcast %30 : vector<1x128xf32> to vector<8x128xf32>
    %33 = arith.mulf %31, %32 : vector<8x128xf32>
    %34 = arith.addf %28, %33 : vector<8x128xf32>
    %cst = arith.constant 0.000000e+00 : f32
    %35 = vector.broadcast %cst : f32 to vector<8x128xf32>
    %36 = arith.maximumf %34, %35 : vector<8x128xf32>
    %37 = arith.truncf %36 : vector<8x128xf32> to vector<8x128xbf16>
    %c0_5 = arith.constant 0 : index
    %c0_6 = arith.constant 0 : index
    %38 = vector.load %arg4[%c0_5, %c0_6] : memref<128x128xbf16, #tpu.memory_space<vmem>>, vector<128x128xbf16>
    %cst_7 = arith.constant dense<0.000000e+00> : vector<8x128xf32>
    %39 = tpu.matmul %37, %38, %cst_7 {dimension_numbers = #tpu.dot_dimension_numbers<[1], [0], [0], [1], [0, 0, 1, 1], [], []>} : vector<8x128xbf16>, vector<128x128xbf16>, vector<8x128xf32> -> vector<8x128xf32>
    %c0_8 = arith.constant 0 : index
    %c0_9 = arith.constant 0 : index
    %40 = vector.load %arg5[%c0_8, %c0_9] : memref<1x128xf32, #tpu.memory_space<vmem>>, vector<1x128xf32>
    %41 = vector.broadcast %40 : vector<1x128xf32> to vector<8x128xf32>
    %42 = arith.addf %39, %41 : vector<8x128xf32>
    %cst_10 = arith.constant 0.000000e+00 : f32
    %43 = vector.broadcast %cst_10 : f32 to vector<8x128xf32>
    %44 = arith.maximumf %42, %43 : vector<8x128xf32>
    %45 = arith.truncf %44 : vector<8x128xf32> to vector<8x128xbf16>
    %c0_11 = arith.constant 0 : index
    %c0_12 = arith.constant 0 : index
    %46 = vector.load %arg6[%c0_11, %c0_12] : memref<128x128xbf16, #tpu.memory_space<vmem>>, vector<128x128xbf16>
    %cst_13 = arith.constant dense<0.000000e+00> : vector<8x128xf32>
    %47 = tpu.matmul %45, %46, %cst_13 {dimension_numbers = #tpu.dot_dimension_numbers<[1], [0], [0], [1], [0, 0, 1, 1], [], []>} : vector<8x128xbf16>, vector<128x128xbf16>, vector<8x128xf32> -> vector<8x128xf32>
    %c0_14 = arith.constant 0 : index
    %c0_15 = arith.constant 0 : index
    %48 = vector.load %arg7[%c0_14, %c0_15] : memref<1x128xf32, #tpu.memory_space<vmem>>, vector<1x128xf32>
    %49 = vector.broadcast %48 : vector<1x128xf32> to vector<8x128xf32>
    %50 = arith.addf %47, %49 : vector<8x128xf32>
    %c0_16 = arith.constant 0 : index
    %c0_17 = arith.constant 0 : index
    %51 = vector.load %arg8[%c0_16, %c0_17] : memref<8x128xf32, #tpu.memory_space<vmem>>, vector<8x128xf32>
    tpu.vector_store %arg8[%c0_16, %c0_17], %50 {strides = array<i32>} : memref<8x128xf32, #tpu.memory_space<vmem>>, vector<8x128xf32>,
    return
  }
  func.func @transform_0(%arg0: i32) -> (i32, i32) {
    %c0_i32 = arith.constant 0 : i32
    %c0_i32_0 = arith.constant 0 : i32
    return %arg0, %c0_i32 : i32, i32
  }
  func.func @transform_1(%arg0: i32) -> (i32, i32) {
    %c0_i32 = arith.constant 0 : i32
    %c0_i32_0 = arith.constant 0 : i32
    %c0_i32_1 = arith.constant 0 : i32
    return %c0_i32, %c0_i32_0 : i32, i32
  }
  func.func @transform_2(%arg0: i32) -> (i32, i32) {
    %c0_i32 = arith.constant 0 : i32
    %c0_i32_0 = arith.constant 0 : i32
    %c0_i32_1 = arith.constant 0 : i32
    return %c0_i32, %c0_i32_0 : i32, i32
  }
  func.func @transform_3(%arg0: i32) -> (i32, i32) {
    %c0_i32 = arith.constant 0 : i32
    %c0_i32_0 = arith.constant 0 : i32
    %c0_i32_1 = arith.constant 0 : i32
    return %c0_i32, %c0_i32_0 : i32, i32
  }
  func.func @transform_4(%arg0: i32) -> (i32, i32) {
    %c0_i32 = arith.constant 0 : i32
    %c0_i32_0 = arith.constant 0 : i32
    %c0_i32_1 = arith.constant 0 : i32
    return %c0_i32, %c0_i32_0 : i32, i32
  }
  func.func @transform_5(%arg0: i32) -> (i32, i32) {
    %c0_i32 = arith.constant 0 : i32
    %c0_i32_0 = arith.constant 0 : i32
    %c0_i32_1 = arith.constant 0 : i32
    return %c0_i32, %c0_i32_0 : i32, i32
  }
  func.func @transform_6(%arg0: i32) -> (i32, i32) {
    %c0_i32 = arith.constant 0 : i32
    %c0_i32_0 = arith.constant 0 : i32
    %c0_i32_1 = arith.constant 0 : i32
    return %c0_i32, %c0_i32_0 : i32, i32
  }
  func.func @transform_7(%arg0: i32) -> (i32, i32) {
    %c0_i32 = arith.constant 0 : i32
    %c0_i32_0 = arith.constant 0 : i32
    return %arg0, %c0_i32 : i32, i32
  }
}

</mosaic_0001>

<llo_original>
// kernel: qnetwork_forward.1
$region0: #{qnetwork_forward.1}
  #allocation0 [shape = 'u32[]', space=smem, size = 0x4, offset = 0x4, fixed_abs, tag = 'smem constant byte address 0x4 - core index']
  #allocation1 [shape = 'u32[144,128]{1,0:T(1,128)}', space=vmem, size = 0x12000, scoped, tag = 'internal scratch']
  %s0 = inlined_call_operand.hbm [shape: f32[8,5], index: 0, kind: input, shape index: {}]
  %s1 = inlined_call_operand.hbm [shape: f32[5,128], index: 1, kind: input, shape index: {}]
  %s2 = inlined_call_operand.vmem [shape: f32[1,128], index: 2, kind: input, shape index: {}]
  %s3 = inlined_call_operand.hbm [shape: bf16[128,128], index: 3, kind: input, shape index: {}]
  %s4 = inlined_call_operand.vmem [shape: f32[1,128], index: 4, kind: input, shape index: {}]
  %s5 = inlined_call_operand.hbm [shape: bf16[128,128], index: 5, kind: input, shape index: {}]
  %s6 = inlined_call_operand.vmem [shape: f32[1,128], index: 6, kind: input, shape index: {}]
  %s7 = inlined_call_operand.hbm [shape: f32[8,128], index: 7, kind: output, shape index: {}]
  %s8 = sld [smem:[#allocation0]]
  $region54: #{qnetwork_forward.1} parent=0
    _
  %s10 = ssub.s32 1, %s8
  %s11 = scalar_select 0, %s10, %s8
  $region1: #{qnetwork_forward.1} parent=0
    #allocation2 [shape = 'u8[4096]{0}', space=vmem, size = 0x1000, scoped, tag = 'input window, operand 0, single buffered']
    #allocation3 [shape = 's32[1]{0}', space=sflag, size = 0x4, scoped, tag = 'scoped memory for qnetwork_forward.1']
    #allocation4 [shape = 's32[1]{0}', space=sflag, size = 0x4, scoped, tag = 'scoped memory for qnetwork_forward.1']
    #allocation5 [shape = 'u8[4096]{0}', space=vmem, size = 0x1000, scoped, tag = 'input window, operand 1, single buffered']
    #allocation6 [shape = 's32[1]{0}', space=sflag, size = 0x4, scoped, tag = 'scoped memory for qnetwork_forward.1']
    #allocation7 [shape = 'u8[32768]{0}', space=vmem, size = 0x8000, scoped, tag = 'input window, operand 3, single buffered']
    #allocation8 [shape = 'u8[32768]{0}', space=vmem, size = 0x8000, scoped, tag = 'input window, operand 5, single buffered']
    #allocation9 [shape = 's32[1]{0}', space=sflag, size = 0x4, scoped, tag = 'scoped memory for qnetwork_forward.1']
    #allocation10 [shape = 'u8[4096]{0}', space=vmem, size = 0x1000, scoped, tag = 'output window, operand 0, single buffered']
    %12 = vsyncpa [#allocation3], 0
    %13 = vsyncpa [#allocation6], 0
    %14 = vsyncpa [#allocation9], 0
    %15 = vsyncpa [#allocation4], 0
    // Predicated region
    $region2: #{qnetwork_forward.1} parent=1 // pred_check
      _
    $region3: #{qnetwork_forward.1} parent=1 // pred_check_branch
      %17 = sbr.rel (0) target = $region5
    $region4: #{qnetwork_forward.1} parent=1 // pred_region
      %s19 = ssub.s32 128, 128
      %20 = vsyncadd [#allocation3], %s19
      %s22 = sshll.u32 [#allocation2], 4
      %s23 = int_to_ptr.vmem [resolvable:$true] %s22
      %25 = dma.hbm_to_vmem [thread:$0]  %s0, 128, %s23, [#allocation3]
    $region5: #{qnetwork_forward.1} parent=1 // pred_fallthru
      _
    // Predicated region
    $region6: #{qnetwork_forward.1} parent=1 // pred_check
      _
    $region7: #{qnetwork_forward.1} parent=1 // pred_check_branch
      %27 = sbr.rel (0) target = $region9
    $region8: #{qnetwork_forward.1} parent=1 // pred_region
      %s29 = ssub.s32 128, 128
      %30 = vsyncadd [#allocation6], %s29
      %s32 = sshll.u32 [#allocation5], 4
      %s33 = int_to_ptr.vmem [resolvable:$true] %s32
      %35 = dma.hbm_to_vmem [thread:$0]  %s1, 128, %s33, [#allocation6]
    $region9: #{qnetwork_forward.1} parent=1 // pred_fallthru
      _
    // Predicated region
    $region10: #{qnetwork_forward.1} parent=1 // pred_check
      _
    $region11: #{qnetwork_forward.1} parent=1 // pred_check_branch
      %37 = sbr.rel (0) target = $region13
    $region12: #{qnetwork_forward.1} parent=1 // pred_region
      _
    $region13: #{qnetwork_forward.1} parent=1 // pred_fallthru
      _
    // Predicated region
    $region14: #{qnetwork_forward.1} parent=1 // pred_check
      _
    $region15: #{qnetwork_forward.1} parent=1 // pred_check_branch
      %39 = sbr.rel (0) target = $region17
    $region16: #{qnetwork_forward.1} parent=1 // pred_region
      %s41 = ssub.s32 1024, 1024
      %42 = vsyncadd [#allocation6], %s41
      %s43 = sshll.u32 [#allocation7], 4
      %s44 = int_to_ptr.vmem [resolvable:$true] %s43
      %49 = dma.hbm_to_vmem [thread:$0]  %s3, 1024, %s44, [#allocation6], 64, 64, 4
    $region17: #{qnetwork_forward.1} parent=1 // pred_fallthru
      _
    // Predicated region
    $region18: #{qnetwork_forward.1} parent=1 // pred_check
      _
    $region19: #{qnetwork_forward.1} parent=1 // pred_check_branch
      %51 = sbr.rel (0) target = $region21
    $region20: #{qnetwork_forward.1} parent=1 // pred_region
      _
    $region21: #{qnetwork_forward.1} parent=1 // pred_fallthru
      _
    // Predicated region
    $region22: #{qnetwork_forward.1} parent=1 // pred_check
      _
    $region23: #{qnetwork_forward.1} parent=1 // pred_check_branch
      %53 = sbr.rel (0) target = $region25
    $region24: #{qnetwork_forward.1} parent=1 // pred_region
      %s55 = ssub.s32 1024, 1024
      %56 = vsyncadd [#allocation9], %s55
      %s57 = sshll.u32 [#allocation8], 4
      %s58 = int_to_ptr.vmem [resolvable:$true] %s57
      %63 = dma.hbm_to_vmem [thread:$0]  %s5, 1024, %s58, [#allocation9], 64, 64, 4
    $region25: #{qnetwork_forward.1} parent=1 // pred_fallthru
      _
    // Predicated region
    $region26: #{qnetwork_forward.1} parent=1 // pred_check
      _
    $region27: #{qnetwork_forward.1} parent=1 // pred_check_branch
      %65 = sbr.rel (0) target = $region29
    $region28: #{qnetwork_forward.1} parent=1 // pred_region
      _
    $region29: #{qnetwork_forward.1} parent=1 // pred_fallthru
      _
    // Predicated region
    $region30: #{qnetwork_forward.1} parent=1 // pred_check
      _
    $region31: #{qnetwork_forward.1} parent=1 // pred_check_branch
      %67 = sbr.rel (0) target = $region33
    $region32: #{qnetwork_forward.1} parent=1 // pred_region
      %68 = dma.done [#allocation3], 128
    $region33: #{qnetwork_forward.1} parent=1 // pred_fallthru
      _
    // Predicated region
    $region34: #{qnetwork_forward.1} parent=1 // pred_check
      _
    $region35: #{qnetwork_forward.1} parent=1 // pred_check_branch
      %70 = sbr.rel (0) target = $region37
    $region36: #{qnetwork_forward.1} parent=1 // pred_region
      %71 = dma.done [#allocation6], 128
    $region37: #{qnetwork_forward.1} parent=1 // pred_fallthru
      _
    // Predicated region
    $region38: #{qnetwork_forward.1} parent=1 // pred_check
      _
    $region39: #{qnetwork_forward.1} parent=1 // pred_check_branch
      %73 = sbr.rel (0) target = $region41
    $region40: #{qnetwork_forward.1} parent=1 // pred_region
      %74 = dma.done [#allocation6], 1024
    $region41: #{qnetwork_forward.1} parent=1 // pred_fallthru
      _
    // Predicated region
    $region42: #{qnetwork_forward.1} parent=1 // pred_check
      _
    $region43: #{qnetwork_forward.1} parent=1 // pred_check_branch
      %76 = sbr.rel (0) target = $region45
    $region44: #{qnetwork_forward.1} parent=1 // pred_region
      %77 = dma.done [#allocation9], 1024
    $region45: #{qnetwork_forward.1} parent=1 // pred_fallthru
      _
    %v79 = vld [vmem:[#allocation2] sm:$0xff]
    %v80 = vld [vmem:[#allocation5] sm:$0x1f]
    %v81 = vld [vmem:[%s2] sm:$0x1]
    %v83 = vlaneseq
    %v84 = vshrl.u32 %v83, 7
    %v85 = vsub.s32 0, %v84
    %v86 = vrot.slane %v81, %v85
    %89 = vset.pattern.permute.xlu0 0
    %90 = vperm.xlu0 %89, %v79
    %v91 = vpop.permute.xlu0 %90
    %v93 = vlaneseq
    %v94 = vshrl.u32 %v93, 7
    %v95 = vsub.s32 0, %v94
    %v96 = vrot.slane %v80, %v95
    %v97 = vmul.f32 %v91, %v96
    %v98 = vadd.f32 %v86, %v97
    %99 = vset.pattern.permute.xlu0 1
    %100 = vperm.xlu0 %99, %v79
    %v101 = vpop.permute.xlu0 %100
    %v103 = vlaneseq
    %v104 = vshrl.u32 %v103, 7
    %v105 = vsub.s32 1, %v104
    %v106 = vrot.slane %v80, %v105
    %v107 = vmul.f32 %v101, %v106
    %v108 = vadd.f32 %v98, %v107
    %109 = vset.pattern.permute.xlu0 2
    %110 = vperm.xlu0 %109, %v79
    %v111 = vpop.permute.xlu0 %110
    %v113 = vlaneseq
    %v114 = vshrl.u32 %v113, 7
    %v115 = vsub.s32 2, %v114
    %v116 = vrot.slane %v80, %v115
    %v117 = vmul.f32 %v111, %v116
    %v118 = vadd.f32 %v108, %v117
    %119 = vset.pattern.permute.xlu0 3
    %120 = vperm.xlu0 %119, %v79
    %v121 = vpop.permute.xlu0 %120
    %v123 = vlaneseq
    %v124 = vshrl.u32 %v123, 7
    %v125 = vsub.s32 3, %v124
    %v126 = vrot.slane %v80, %v125
    %v127 = vmul.f32 %v121, %v126
    %v128 = vadd.f32 %v118, %v127
    %129 = vset.pattern.permute.xlu0 4
    %130 = vperm.xlu0 %129, %v79
    %v131 = vpop.permute.xlu0 %130
    %v133 = vlaneseq
    %v134 = vshrl.u32 %v133, 7
    %v135 = vsub.s32 4, %v134
    %v136 = vrot.slane %v80, %v135
    %v137 = vmul.f32 %v131, %v136
    %v138 = vadd.f32 %v128, %v137
    %v139 = vmax.f32 %v138, 0.0
    %v140 = vpack.c.bf16 %v139, %v139
    %v141 = vld [vmem:[#allocation7] sm:$0xf]
    %v142 = vld [vmem:[#allocation7 + $0x4] sm:$0xf]
    %v143 = vld [vmem:[#allocation7 + $0x8] sm:$0xf]
    %v144 = vld [vmem:[#allocation7 + $0xc] sm:$0xf]
    %v145 = vld [vmem:[#allocation7 + $0x10] sm:$0xf]
    %v146 = vld [vmem:[#allocation7 + $0x14] sm:$0xf]
    %v147 = vld [vmem:[#allocation7 + $0x18] sm:$0xf]
    %v148 = vld [vmem:[#allocation7 + $0x1c] sm:$0xf]
    %v149 = vld [vmem:[#allocation7 + $0x20] sm:$0xf]
    %v150 = vld [vmem:[#allocation7 + $0x24] sm:$0xf]
    %v151 = vld [vmem:[#allocation7 + $0x28] sm:$0xf]
    %v152 = vld [vmem:[#allocation7 + $0x2c] sm:$0xf]
    %v153 = vld [vmem:[#allocation7 + $0x30] sm:$0xf]
    %v154 = vld [vmem:[#allocation7 + $0x34] sm:$0xf]
    %v155 = vld [vmem:[#allocation7 + $0x38] sm:$0xf]
    %v156 = vld [vmem:[#allocation7 + $0x3c] sm:$0xf]
    %v157 = vld [vmem:[%s4] sm:$0x1]
    %v159 = vlaneseq
    %v160 = vshrl.u32 %v159, 7
    %v161 = vsub.s32 0, %v160
    %v162 = vrot.slane %v157, %v161
    %v180 = vunpack.c.l.b16 %v141
    %v181 = vunpack.c.l.b16 %v142
    %v182 = vunpack.c.l.b16 %v143
    %v183 = vunpack.c.l.b16 %v144
    %v184 = vunpack.c.l.b16 %v145
    %v185 = vunpack.c.l.b16 %v146
    %v186 = vunpack.c.l.b16 %v147
    %v187 = vunpack.c.l.b16 %v148
    %v188 = vunpack.c.l.b16 %v149
    %v189 = vunpack.c.l.b16 %v150
    %v190 = vunpack.c.l.b16 %v151
    %v191 = vunpack.c.l.b16 %v152
    %v192 = vunpack.c.l.b16 %v153
    %v193 = vunpack.c.l.b16 %v154
    %v194 = vunpack.c.l.b16 %v155
    %v195 = vunpack.c.l.b16 %v156
    %v196 = vpack.c.b16 %v181, %v180
    %v197 = vpack.c.b16 %v183, %v182
    %v198 = vpack.c.b16 %v185, %v184
    %v199 = vpack.c.b16 %v187, %v186
    %v200 = vpack.c.b16 %v189, %v188
    %v201 = vpack.c.b16 %v191, %v190
    %v202 = vpack.c.b16 %v193, %v192
    %v203 = vpack.c.b16 %v195, %v194
    %212 = vmatprep.subr.bf16.mxu0 0
    %213 = vmatpush1.bf16.msra.mxu0 %v196
    %214 = vmatprep.subr.bf16.mxu0 0
    %215 = vmatpush1.bf16.msra.mxu0 %v197
    %216 = vmatprep.subr.bf16.mxu0 0
    %217 = vmatpush1.bf16.msra.mxu0 %v198
    %218 = vmatprep.subr.bf16.mxu0 0
    %219 = vmatpush1.bf16.msra.mxu0 %v199
    %220 = vmatprep.subr.bf16.mxu0 0
    %221 = vmatpush1.bf16.msra.mxu0 %v200
    %222 = vmatprep.subr.bf16.mxu0 0
    %223 = vmatpush1.bf16.msra.mxu0 %v201
    %224 = vmatprep.subr.bf16.mxu0 0
    %225 = vmatpush1.bf16.msra.mxu0 %v202
    %226 = vmatprep.subr.bf16.mxu0 0
    %227 = vmatpush1.bf16.msra.mxu0 %v203
    %228 = vmatprep.subr.bf16.mxu0 0
    %229 = vmatpush1.bf16.msra.mxu0 0
    %230 = vmatprep.subr.bf16.mxu0 0
    %231 = vmatpush1.bf16.msra.mxu0 0
    %232 = vmatprep.subr.bf16.mxu0 0
    %233 = vmatpush1.bf16.msra.mxu0 0
    %234 = vmatprep.subr.bf16.mxu0 0
    %235 = vmatpush1.bf16.msra.mxu0 0
    %236 = vmatprep.subr.bf16.mxu0 0
    %237 = vmatpush1.bf16.msra.mxu0 0
    %238 = vmatprep.subr.bf16.mxu0 0
    %239 = vmatpush1.bf16.msra.mxu0 0
    %240 = vmatprep.subr.bf16.mxu0 0
    %241 = vmatpush1.bf16.msra.mxu0 0
    %242 = vmatprep.subr.bf16.mxu0 0
    %243 = vmatpush1.bf16.msra.mxu0 0
    %244 = vmatprep.mubr.bf16.mxu0 0
    %245 = vmatmul.mubr.bf16.gmra.mrb[0].mxu0 %v140
    %v246 = vpop.f32.mrb[0].mxu0
    %v247 = vadd.f32 %v162, %v246
    %v248 = vpop.f32.mrb[0].mxu0
    %v249 = vpop.f32.mrb[0].mxu0
    %v250 = vpop.f32.mrb[0].mxu0
    %251 = vdwg.mxu0
    %v252 = vmax.f32 %v247, 0.0
    %v253 = vpack.c.bf16 %v252, %v252
    %v254 = vld [vmem:[#allocation8] sm:$0xf]
    %v255 = vld [vmem:[#allocation8 + $0x4] sm:$0xf]
    %v256 = vld [vmem:[#allocation8 + $0x8] sm:$0xf]
    %v257 = vld [vmem:[#allocation8 + $0xc] sm:$0xf]
    %v258 = vld [vmem:[#allocation8 + $0x10] sm:$0xf]
    %v259 = vld [vmem:[#allocation8 + $0x14] sm:$0xf]
    %v260 = vld [vmem:[#allocation8 + $0x18] sm:$0xf]
    %v261 = vld [vmem:[#allocation8 + $0x1c] sm:$0xf]
    %v262 = vld [vmem:[#allocation8 + $0x20] sm:$0xf]
    %v263 = vld [vmem:[#allocation8 + $0x24] sm:$0xf]
    %v264 = vld [vmem:[#allocation8 + $0x28] sm:$0xf]
    %v265 = vld [vmem:[#allocation8 + $0x2c] sm:$0xf]
    %v266 = vld [vmem:[#allocation8 + $0x30] sm:$0xf]
    %v267 = vld [vmem:[#allocation8 + $0x34] sm:$0xf]
    %v268 = vld [vmem:[#allocation8 + $0x38] sm:$0xf]
    %v269 = vld [vmem:[#allocation8 + $0x3c] sm:$0xf]
    %v270 = vld [vmem:[%s6] sm:$0x1]
    %v272 = vlaneseq
    %v273 = vshrl.u32 %v272, 7
    %v274 = vsub.s32 0, %v273
    %v275 = vrot.slane %v270, %v274
    %v293 = vunpack.c.l.b16 %v254
    %v294 = vunpack.c.l.b16 %v255
    %v295 = vunpack.c.l.b16 %v256
    %v296 = vunpack.c.l.b16 %v257
    %v297 = vunpack.c.l.b16 %v258
    %v298 = vunpack.c.l.b16 %v259
    %v299 = vunpack.c.l.b16 %v260
    %v300 = vunpack.c.l.b16 %v261
    %v301 = vunpack.c.l.b16 %v262
    %v302 = vunpack.c.l.b16 %v263
    %v303 = vunpack.c.l.b16 %v264
    %v304 = vunpack.c.l.b16 %v265
    %v305 = vunpack.c.l.b16 %v266
    %v306 = vunpack.c.l.b16 %v267
    %v307 = vunpack.c.l.b16 %v268
    %v308 = vunpack.c.l.b16 %v269
    %v309 = vpack.c.b16 %v294, %v293
    %v310 = vpack.c.b16 %v296, %v295
    %v311 = vpack.c.b16 %v298, %v297
    %v312 = vpack.c.b16 %v300, %v299
    %v313 = vpack.c.b16 %v302, %v301
    %v314 = vpack.c.b16 %v304, %v303
    %v315 = vpack.c.b16 %v306, %v305
    %v316 = vpack.c.b16 %v308, %v307
    %325 = vmatprep.subr.bf16.mxu0 0
    %326 = vmatpush1.bf16.msra.mxu0 %v309
    %327 = vmatprep.subr.bf16.mxu0 0
    %328 = vmatpush1.bf16.msra.mxu0 %v310
    %329 = vmatprep.subr.bf16.mxu0 0
    %330 = vmatpush1.bf16.msra.mxu0 %v311
    %331 = vmatprep.subr.bf16.mxu0 0
    %332 = vmatpush1.bf16.msra.mxu0 %v312
    %333 = vmatprep.subr.bf16.mxu0 0
    %334 = vmatpush1.bf16.msra.mxu0 %v313
    %335 = vmatprep.subr.bf16.mxu0 0
    %336 = vmatpush1.bf16.msra.mxu0 %v314
    %337 = vmatprep.subr.bf16.mxu0 0
    %338 = vmatpush1.bf16.msra.mxu0 %v315
    %339 = vmatprep.subr.bf16.mxu0 0
    %340 = vmatpush1.bf16.msra.mxu0 %v316
    %341 = vmatprep.subr.bf16.mxu0 0
    %342 = vmatpush1.bf16.msra.mxu0 0
    %343 = vmatprep.subr.bf16.mxu0 0
    %344 = vmatpush1.bf16.msra.mxu0 0
    %345 = vmatprep.subr.bf16.mxu0 0
    %346 = vmatpush1.bf16.msra.mxu0 0
    %347 = vmatprep.subr.bf16.mxu0 0
    %348 = vmatpush1.bf16.msra.mxu0 0
    %349 = vmatprep.subr.bf16.mxu0 0
    %350 = vmatpush1.bf16.msra.mxu0 0
    %351 = vmatprep.subr.bf16.mxu0 0
    %352 = vmatpush1.bf16.msra.mxu0 0
    %353 = vmatprep.subr.bf16.mxu0 0
    %354 = vmatpush1.bf16.msra.mxu0 0
    %355 = vmatprep.subr.bf16.mxu0 0
    %356 = vmatpush1.bf16.msra.mxu0 0
    %357 = vmatprep.mubr.bf16.mxu0 0
    %358 = vmatmul.mubr.bf16.gmra.mrb[0].mxu0 %v253
    %v359 = vpop.f32.mrb[0].mxu0
    %v360 = vadd.f32 %v275, %v359
    %v361 = vpop.f32.mrb[0].mxu0
    %v362 = vpop.f32.mrb[0].mxu0
    %v363 = vpop.f32.mrb[0].mxu0
    %364 = vdwg.mxu0
    %365 = vst [vmem:[#allocation10] sm:$0xff] %v360
    // Predicated region
    $region46: #{qnetwork_forward.1} parent=1 // pred_check
      _
    $region47: #{qnetwork_forward.1} parent=1 // pred_check_branch
      %367 = sbr.rel (0) target = $region49
    $region48: #{qnetwork_forward.1} parent=1 // pred_region
      %s369 = ssub.s32 128, 128
      %370 = vsyncadd [#allocation4], %s369
      %s372 = sshll.u32 [#allocation10], 4
      %s373 = int_to_ptr.vmem [resolvable:$true] %s372
      %375 = dma.vmem_to_hbm [thread:$0]  %s373, 128, %s7, [#allocation4]
    $region49: #{qnetwork_forward.1} parent=1 // pred_fallthru
      _
    // Predicated region
    $region50: #{qnetwork_forward.1} parent=1 // pred_check
      _
    $region51: #{qnetwork_forward.1} parent=1 // pred_check_branch
      %377 = sbr.rel (0) target = $region53
    $region52: #{qnetwork_forward.1} parent=1 // pred_region
      %378 = dma.done [#allocation4], 128
    $region53: #{qnetwork_forward.1} parent=1 // pred_fallthru
      _
    %379 = vsyncpa [#allocation3], 1
    %380 = vsyncpa [#allocation6], 1
    %381 = vsyncpa [#allocation9], 1
    %382 = vsyncpa [#allocation4], 1

</llo_original>
